<compile_context>
chip_gen: v5e
topology: v5e:2x2
jax: 0.10.0
libtpu: 0.0.40
codegen_flags: <defaults>
</compile_context>

<pallas_src>
import functools

import jax
import jax.numpy as jnp
import numpy as np
from jax import lax
from jax.experimental import pallas as pl
from jax.experimental.pallas import tpu as pltpu


def basic_block_kernel(x_ref, w1_ref, b1_ref, w2_ref, b2_ref, m_ref, out_ref,
                       *, width):
    """One grid step processes Nb folded batch images (L = Nb*HW lanes).

    x_ref  : [1, Cin, L]   images side-by-side on the lane axis
    w1_ref : [C, 9*Cin]    conv1 weights (BN1 scale folded in), tap-major cols
    w2_ref : [C, 9*C]      conv2 weights (BN2 scale folded in), tap-major cols
    b*_ref : [C, 1]        fused BN bias = beta - mean * scale
    m_ref  : [8, L]        {0,1} f32 masks for the 8 non-center 3x3 taps
    out_ref: [1, C, L]
    """
    W = width
    L = x_ref.shape[-1]

    x = x_ref[0]                                   # [Cin, L] (Cin == C here)
    masks = m_ref[...]                             # [8, L], resident constant

    def shifted_taps(val):
        """9 spatially shifted copies of val ([C, L]), zero-filled at image
        borders (== 3x3 conv, padding 1). Tap order: ki outer, kj inner."""
        outs = []
        for ki in range(3):
            for kj in range(3):
                di, dj = ki - 1, kj - 1
                s = di * W + dj                    # flat-index shift
                t = ki * 3 + kj
                if s == 0:
                    outs.append(val)
                else:
                    r = t if t < 4 else t - 1      # mask row (center skipped)
                    # rolled[:, p] == val[:, (p + s) % L]; the mask zeroes
                    # both border wraps and cross-image wraps.
                    rolled = pltpu.roll(val, shift=(-s) % L, axis=1)
                    outs.append(rolled * masks[r:r + 1, :])
        return outs

    # ---- conv1 (BN1 scale pre-folded): one K = 9*Cin matmul ----
    patches1 = jnp.concatenate(shifted_taps(x), axis=0)         # [9*Cin, L]
    acc1 = jnp.dot(w1_ref[...], patches1,
                   preferred_element_type=jnp.float32)          # [C, L]
    mid = jnp.maximum(acc1 + b1_ref[...], 0.0)                  # bn1 bias + relu

    # ---- conv2 (BN2 scale pre-folded) ----
    patches2 = jnp.concatenate(shifted_taps(mid), axis=0)       # [9*C, L]
    acc2 = jnp.dot(w2_ref[...], patches2,
                   preferred_element_type=jnp.float32)          # [C, L]

    # ---- bn2 bias + residual add + relu, lane-dense store ----
    out_ref[0] = jnp.maximum(acc2 + b2_ref[...] + x, 0.0).astype(out_ref.dtype)


def _pick_nb(N, C, HW, *, vmem_budget_bytes=24 << 20):
    """Images folded per grid step.

    Amortizes rolls / masks / per-step pipeline overhead, keeps >= 2 grid
    steps when N >= 2 so both v7x TensorCores get work, and budgets against
    v7x's smaller VMEM (64 MiB physical / ~32 MiB scoped default)."""
    # per-image bytes: double-buffered x + out blocks and the two 9*C patches
    # temporaries that live in VMEM/vregs during the matmuls.
    per_img = (2 * 2 * C * HW + 2 * 9 * C * HW) * 4
    nb = max(1, min(N, vmem_budget_bytes // max(per_img, 1)))
    nb = min(nb, max(1, N // 2))          # keep >= 2 parallel steps (v7x)
    while N % nb:                         # grid must tile N exactly
        nb -= 1
    return nb


@jax.jit
def basic_block_pallas(x_nchw, w1_oihw, w2_oihw, s1, b1, s2, b2):
    """x_nchw: [N, C, H, W] f32; conv weights in PyTorch OIHW. Returns NCHW."""
    N, Cin, H, W = x_nchw.shape
    C = w1_oihw.shape[0]
    assert Cin == C, "kernel assumes inplanes == planes, stride=1, no downsample"
    HW = H * W

    Nb = _pick_nb(N, C, HW)
    G = N // Nb
    L = Nb * HW

    # [N, C, H, W] -> [G, Cin, Nb*HW]: Nb images side-by-side on the lane axis
    # (tiny HBM-side relayout; the kernel is overhead-bound, not HBM-bound).
    x_g = (x_nchw.reshape(G, Nb, Cin, HW)
           .transpose(0, 2, 1, 3)
           .reshape(G, Cin, L))

    # OIHW -> [Cout, kh*kw*Cin], tap-major / cin-minor columns (matching the
    # in-kernel tap concat order), with the BN scale folded in (exact: the
    # per-output-channel scale distributes over the conv sum).
    w1t = jnp.transpose(w1_oihw, (0, 2, 3, 1)).reshape(C, 9 * Cin) * s1[:, None]
    w2t = jnp.transpose(w2_oihw, (0, 2, 3, 1)).reshape(C, 9 * C) * s2[:, None]
    b1c, b2c = b1.reshape(C, 1), b2.reshape(C, 1)

    # {0,1} masks for the 8 non-center taps, keyed on lane position mod HW so
    # both image-border and cross-image roll wraps are zeroed. Computed once
    # at trace time (static shapes), DMA'd once, stays resident.
    p = np.arange(L) % HW
    hh, ww = p // W, p % W
    rows = []
    for ki in range(3):
        for kj in range(3):
            if ki == 1 and kj == 1:
                continue
            di, dj = ki - 1, kj - 1
            ok = (hh + di >= 0) & (hh + di < H) & (ww + dj >= 0) & (ww + dj < W)
            rows.append(ok)
    masks = jnp.asarray(np.stack(rows).astype(np.float32))       # [8, L]

    kernel = functools.partial(basic_block_kernel, width=W)

    grid_spec = pltpu.PrefetchScalarGridSpec(
        num_scalar_prefetch=0,
        grid=(G,),
        in_specs=[
            pl.BlockSpec((1, Cin, L), lambda g: (g, 0, 0)),
            pl.BlockSpec((C, 9 * Cin), lambda g: (0, 0)),
            pl.BlockSpec((C, 1), lambda g: (0, 0)),
            pl.BlockSpec((C, 9 * C), lambda g: (0, 0)),
            pl.BlockSpec((C, 1), lambda g: (0, 0)),
            pl.BlockSpec((8, L), lambda g: (0, 0)),
        ],
        out_specs=pl.BlockSpec((1, C, L), lambda g: (g, 0, 0)),
    )

    out_g = pl.pallas_call(
        kernel,
        out_shape=jax.ShapeDtypeStruct((G, C, L), jnp.float32),
        grid_spec=grid_spec,
        compiler_params=pltpu.CompilerParams(
            dimension_semantics=("parallel",)),
    )(x_g, w1t, b1c, w2t, b2c, masks)

    return (out_g.reshape(G, C, Nb, HW)
            .transpose(0, 2, 1, 3)
            .reshape(N, C, H, W))


def basic_block_ref(x_nchw, w1_oihw, w2_oihw, s1, b1, s2, b2):
    """Plain-JAX NCHW reference."""
    dn = ("NCHW", "OIHW", "NCHW")
    out = lax.conv_general_dilated(x_nchw, w1_oihw, (1, 1), ((1, 1), (1, 1)),
                                   dimension_numbers=dn)
    out = jnp.maximum(out * s1.reshape(1, -1, 1, 1) + b1.reshape(1, -1, 1, 1), 0.0)
    out = lax.conv_general_dilated(out, w2_oihw, (1, 1), ((1, 1), (1, 1)),
                                   dimension_numbers=dn)
    out = out * s2.reshape(1, -1, 1, 1) + b2.reshape(1, -1, 1, 1) + x_nchw
    return jnp.maximum(out, 0.0)


if __name__ == "__main__":
    # BasicBlock(inplanes=8, planes=8, stride=1), small spatial size.
    # N=4 exercises the batch-fold path (Nb=2 images per grid step, grid=2).
    N, C, H, W = 4, 8, 16, 16
    eps = 1e-5

    key = jax.random.PRNGKey(0)
    (kx, kw1, kw2, kg1, kb1, km1, kv1,
     kg2, kb2, km2, kv2) = jax.random.split(key, 11)

    x_nchw = jax.random.normal(kx, (N, C, H, W), dtype=jnp.float32)

    # Conv weights in PyTorch OIHW convention.
    w1_oihw = jax.random.normal(kw1, (C, C, 3, 3), dtype=jnp.float32) * 0.1
    w2_oihw = jax.random.normal(kw2, (C, C, 3, 3), dtype=jnp.float32) * 0.1

    # Deterministic inference-mode BatchNorm params fused into scale/bias.
    def fused_bn(kg, kb, km, kv):
        gamma = 1.0 + 0.1 * jax.random.normal(kg, (C,), dtype=jnp.float32)
        beta = 0.1 * jax.random.normal(kb, (C,), dtype=jnp.float32)
        mean = 0.1 * jax.random.normal(km, (C,), dtype=jnp.float32)
        var = jnp.abs(jax.random.normal(kv, (C,), dtype=jnp.float32)) + 0.5
        scale = gamma / jnp.sqrt(var + eps)
        bias = beta - mean * scale
        return scale, bias

    s1, b1 = fused_bn(kg1, kb1, km1, kv1)
    s2, b2 = fused_bn(kg2, kb2, km2, kv2)

    out = jax.block_until_ready(
        basic_block_pallas(x_nchw, w1_oihw, w2_oihw, s1, b1, s2, b2))

    ref = jax.block_until_ready(
        basic_block_ref(x_nchw, w1_oihw, w2_oihw, s1, b1, s2, b2))
    np.testing.assert_allclose(np.asarray(out), np.asarray(ref),
                               rtol=2e-4, atol=2e-4)

    print("KERNEL_OK")
</pallas_src>

<mosaic_0001>
module attributes {stable_mosaic.version = 11 : i64} {
  func.func @basic_block_kernel(%arg0: i32, %arg1: memref<1x8x512xf32, #tpu.memory_space<vmem>>, %arg2: memref<8x72xf32, #tpu.memory_space<vmem>>, %arg3: memref<8x1xf32, #tpu.memory_space<vmem>>, %arg4: memref<8x72xf32, #tpu.memory_space<vmem>>, %arg5: memref<8x1xf32, #tpu.memory_space<vmem>>, %arg6: memref<8x512xf32, #tpu.memory_space<vmem>>, %arg7: memref<1x8x512xf32, #tpu.memory_space<vmem>>) attributes {dimension_semantics = [#tpu.dimension_semantics<parallel>], iteration_bounds = array<i64: 2>, scalar_prefetch = 0 : i64, scratch_operands = 0 : i64, tpu.core_type = #tpu.core_type<tc>, window_params = [{transform_indices = @transform_0, window_bounds = array<i64: 1, 8, 512>}, {pipeline_mode = #tpu.pipeline_mode<synchronous>, transform_indices = @transform_1, window_bounds = array<i64: 8, 72>}, {pipeline_mode = #tpu.pipeline_mode<synchronous>, transform_indices = @transform_2, window_bounds = array<i64: 8, 1>}, {pipeline_mode = #tpu.pipeline_mode<synchronous>, transform_indices = @transform_3, window_bounds = array<i64: 8, 72>}, {pipeline_mode = #tpu.pipeline_mode<synchronous>, transform_indices = @transform_4, window_bounds = array<i64: 8, 1>}, {pipeline_mode = #tpu.pipeline_mode<synchronous>, transform_indices = @transform_5, window_bounds = array<i64: 8, 512>}, {transform_indices = @transform_6, window_bounds = array<i64: 1, 8, 512>}]} {
    %c0 = arith.constant 0 : index
    %c0_0 = arith.constant 0 : index
    %c0_1 = arith.constant 0 : index
    %0 = vector.load %arg1[%c0, %c0_0, %c0_1] : memref<1x8x512xf32, #tpu.memory_space<vmem>>, vector<1x8x512xf32>
    %1 = vector.shape_cast %0 : vector<1x8x512xf32> to vector<8x512xf32>
    %c0_2 = arith.constant 0 : index
    %c0_3 = arith.constant 0 : index
    %2 = vector.load %arg6[%c0_2, %c0_3] : memref<8x512xf32, #tpu.memory_space<vmem>>, vector<8x512xf32>
    %c17_i32 = arith.constant 17 : i32
    %3 = tpu.dynamic_rotate %1 by %c17_i32 dim 1 : vector<8x512xf32>, i32 -> vector<8x512xf32>
    %4 = vector.extract_strided_slice %2 {offsets = [0, 0], sizes = [1, 512], strides = [1, 1]} : vector<8x512xf32> to vector<1x512xf32>
    %5 = vector.broadcast %4 : vector<1x512xf32> to vector<8x512xf32>
    %6 = arith.mulf %3, %5 : vector<8x512xf32>
    %c16_i32 = arith.constant 16 : i32
    %7 = tpu.dynamic_rotate %1 by %c16_i32 dim 1 : vector<8x512xf32>, i32 -> vector<8x512xf32>
    %8 = vector.extract_strided_slice %2 {offsets = [1, 0], sizes = [1, 512], strides = [1, 1]} : vector<8x512xf32> to vector<1x512xf32>
    %9 = vector.broadcast %8 : vector<1x512xf32> to vector<8x512xf32>
    %10 = arith.mulf %7, %9 : vector<8x512xf32>
    %c15_i32 = arith.constant 15 : i32
    %11 = tpu.dynamic_rotate %1 by %c15_i32 dim 1 : vector<8x512xf32>, i32 -> vector<8x512xf32>
    %12 = vector.extract_strided_slice %2 {offsets = [2, 0], sizes = [1, 512], strides = [1, 1]} : vector<8x512xf32> to vector<1x512xf32>
    %13 = vector.broadcast %12 : vector<1x512xf32> to vector<8x512xf32>
    %14 = arith.mulf %11, %13 : vector<8x512xf32>
    %c1_i32 = arith.constant 1 : i32
    %15 = tpu.dynamic_rotate %1 by %c1_i32 dim 1 : vector<8x512xf32>, i32 -> vector<8x512xf32>
    %16 = vector.extract_strided_slice %2 {offsets = [3, 0], sizes = [1, 512], strides = [1, 1]} : vector<8x512xf32> to vector<1x512xf32>
    %17 = vector.broadcast %16 : vector<1x512xf32> to vector<8x512xf32>
    %18 = arith.mulf %15, %17 : vector<8x512xf32>
    %c511_i32 = arith.constant 511 : i32
    %19 = tpu.dynamic_rotate %1 by %c511_i32 dim 1 : vector<8x512xf32>, i32 -> vector<8x512xf32>
    %20 = vector.extract_strided_slice %2 {offsets = [4, 0], sizes = [1, 512], strides = [1, 1]} : vector<8x512xf32> to vector<1x512xf32>
    %21 = vector.broadcast %20 : vector<1x512xf32> to vector<8x512xf32>
    %22 = arith.mulf %19, %21 : vector<8x512xf32>
    %c497_i32 = arith.constant 497 : i32
    %23 = tpu.dynamic_rotate %1 by %c497_i32 dim 1 : vector<8x512xf32>, i32 -> vector<8x512xf32>
    %24 = vector.extract_strided_slice %2 {offsets = [5, 0], sizes = [1, 512], strides = [1, 1]} : vector<8x512xf32> to vector<1x512xf32>
    %25 = vector.broadcast %24 : vector<1x512xf32> to vector<8x512xf32>
    %26 = arith.mulf %23, %25 : vector<8x512xf32>
    %c496_i32 = arith.constant 496 : i32
    %27 = tpu.dynamic_rotate %1 by %c496_i32 dim 1 : vector<8x512xf32>, i32 -> vector<8x512xf32>
    %28 = vector.extract_strided_slice %2 {offsets = [6, 0], sizes = [1, 512], strides = [1, 1]} : vector<8x512xf32> to vector<1x512xf32>
    %29 = vector.broadcast %28 : vector<1x512xf32> to vector<8x512xf32>
    %30 = arith.mulf %27, %29 : vector<8x512xf32>
    %c495_i32 = arith.constant 495 : i32
    %31 = tpu.dynamic_rotate %1 by %c495_i32 dim 1 : vector<8x512xf32>, i32 -> vector<8x512xf32>
    %32 = vector.extract_strided_slice %2 {offsets = [7, 0], sizes = [1, 512], strides = [1, 1]} : vector<8x512xf32> to vector<1x512xf32>
    %33 = vector.broadcast %32 : vector<1x512xf32> to vector<8x512xf32>
    %34 = arith.mulf %31, %33 : vector<8x512xf32>
    %35 = tpu.concatenate %6, %10, %14, %18, %1, %22, %26, %30, %34 in 0 : vector<8x512xf32>, vector<8x512xf32>, vector<8x512xf32>, vector<8x512xf32>, vector<8x512xf32>, vector<8x512xf32>, vector<8x512xf32>, vector<8x512xf32>, vector<8x512xf32> -> vector<72x512xf32>
    %c0_4 = arith.constant 0 : index
    %c0_5 = arith.constant 0 : index
    %36 = vector.load %arg2[%c0_4, %c0_5] : memref<8x72xf32, #tpu.memory_space<vmem>>, vector<8x72xf32>
    %cst = arith.constant dense<0.000000e+00> : vector<8x512xf32>
    %37 = tpu.matmul %36, %35, %cst {dimension_numbers = #tpu.dot_dimension_numbers<[1], [0], [0], [1], [0, 0, 1, 1], [], []>} : vector<8x72xf32>, vector<72x512xf32>, vector<8x512xf32> -> vector<8x512xf32>
    %c0_6 = arith.constant 0 : index
    %c0_7 = arith.constant 0 : index
    %38 = vector.load %arg3[%c0_6, %c0_7] : memref<8x1xf32, #tpu.memory_space<vmem>>, vector<8x1xf32>
    %39 = vector.broadcast %38 : vector<8x1xf32> to vector<8x512xf32>
    %40 = arith.addf %37, %39 : vector<8x512xf32>
    %cst_8 = arith.constant 0.000000e+00 : f32
    %41 = vector.broadcast %cst_8 : f32 to vector<8x512xf32>
    %42 = arith.maximumf %40, %41 : vector<8x512xf32>
    %c17_i32_9 = arith.constant 17 : i32
    %43 = tpu.dynamic_rotate %42 by %c17_i32_9 dim 1 : vector<8x512xf32>, i32 -> vector<8x512xf32>
    %44 = vector.extract_strided_slice %2 {offsets = [0, 0], sizes = [1, 512], strides = [1, 1]} : vector<8x512xf32> to vector<1x512xf32>
    %45 = vector.broadcast %44 : vector<1x512xf32> to vector<8x512xf32>
    %46 = arith.mulf %43, %45 : vector<8x512xf32>
    %c16_i32_10 = arith.constant 16 : i32
    %47 = tpu.dynamic_rotate %42 by %c16_i32_10 dim 1 : vector<8x512xf32>, i32 -> vector<8x512xf32>
    %48 = vector.extract_strided_slice %2 {offsets = [1, 0], sizes = [1, 512], strides = [1, 1]} : vector<8x512xf32> to vector<1x512xf32>
    %49 = vector.broadcast %48 : vector<1x512xf32> to vector<8x512xf32>
    %50 = arith.mulf %47, %49 : vector<8x512xf32>
    %c15_i32_11 = arith.constant 15 : i32
    %51 = tpu.dynamic_rotate %42 by %c15_i32_11 dim 1 : vector<8x512xf32>, i32 -> vector<8x512xf32>
    %52 = vector.extract_strided_slice %2 {offsets = [2, 0], sizes = [1, 512], strides = [1, 1]} : vector<8x512xf32> to vector<1x512xf32>
    %53 = vector.broadcast %52 : vector<1x512xf32> to vector<8x512xf32>
    %54 = arith.mulf %51, %53 : vector<8x512xf32>
    %c1_i32_12 = arith.constant 1 : i32
    %55 = tpu.dynamic_rotate %42 by %c1_i32_12 dim 1 : vector<8x512xf32>, i32 -> vector<8x512xf32>
    %56 = vector.extract_strided_slice %2 {offsets = [3, 0], sizes = [1, 512], strides = [1, 1]} : vector<8x512xf32> to vector<1x512xf32>
    %57 = vector.broadcast %56 : vector<1x512xf32> to vector<8x512xf32>
    %58 = arith.mulf %55, %57 : vector<8x512xf32>
    %c511_i32_13 = arith.constant 511 : i32
    %59 = tpu.dynamic_rotate %42 by %c511_i32_13 dim 1 : vector<8x512xf32>, i32 -> vector<8x512xf32>
    %60 = vector.extract_strided_slice %2 {offsets = [4, 0], sizes = [1, 512], strides = [1, 1]} : vector<8x512xf32> to vector<1x512xf32>
    %61 = vector.broadcast %60 : vector<1x512xf32> to vector<8x512xf32>
    %62 = arith.mulf %59, %61 : vector<8x512xf32>
    %c497_i32_14 = arith.constant 497 : i32
    %63 = tpu.dynamic_rotate %42 by %c497_i32_14 dim 1 : vector<8x512xf32>, i32 -> vector<8x512xf32>
    %64 = vector.extract_strided_slice %2 {offsets = [5, 0], sizes = [1, 512], strides = [1, 1]} : vector<8x512xf32> to vector<1x512xf32>
    %65 = vector.broadcast %64 : vector<1x512xf32> to vector<8x512xf32>
    %66 = arith.mulf %63, %65 : vector<8x512xf32>
    %c496_i32_15 = arith.constant 496 : i32
    %67 = tpu.dynamic_rotate %42 by %c496_i32_15 dim 1 : vector<8x512xf32>, i32 -> vector<8x512xf32>
    %68 = vector.extract_strided_slice %2 {offsets = [6, 0], sizes = [1, 512], strides = [1, 1]} : vector<8x512xf32> to vector<1x512xf32>
    %69 = vector.broadcast %68 : vector<1x512xf32> to vector<8x512xf32>
    %70 = arith.mulf %67, %69 : vector<8x512xf32>
    %c495_i32_16 = arith.constant 495 : i32
    %71 = tpu.dynamic_rotate %42 by %c495_i32_16 dim 1 : vector<8x512xf32>, i32 -> vector<8x512xf32>
    %72 = vector.extract_strided_slice %2 {offsets = [7, 0], sizes = [1, 512], strides = [1, 1]} : vector<8x512xf32> to vector<1x512xf32>
    %73 = vector.broadcast %72 : vector<1x512xf32> to vector<8x512xf32>
    %74 = arith.mulf %71, %73 : vector<8x512xf32>
    %75 = tpu.concatenate %46, %50, %54, %58, %42, %62, %66, %70, %74 in 0 : vector<8x512xf32>, vector<8x512xf32>, vector<8x512xf32>, vector<8x512xf32>, vector<8x512xf32>, vector<8x512xf32>, vector<8x512xf32>, vector<8x512xf32>, vector<8x512xf32> -> vector<72x512xf32>
    %c0_17 = arith.constant 0 : index
    %c0_18 = arith.constant 0 : index
    %76 = vector.load %arg4[%c0_17, %c0_18] : memref<8x72xf32, #tpu.memory_space<vmem>>, vector<8x72xf32>
    %cst_19 = arith.constant dense<0.000000e+00> : vector<8x512xf32>
    %77 = tpu.matmul %76, %75, %cst_19 {dimension_numbers = #tpu.dot_dimension_numbers<[1], [0], [0], [1], [0, 0, 1, 1], [], []>} : vector<8x72xf32>, vector<72x512xf32>, vector<8x512xf32> -> vector<8x512xf32>
    %c0_20 = arith.constant 0 : index
    %c0_21 = arith.constant 0 : index
    %78 = vector.load %arg5[%c0_20, %c0_21] : memref<8x1xf32, #tpu.memory_space<vmem>>, vector<8x1xf32>
    %79 = vector.broadcast %78 : vector<8x1xf32> to vector<8x512xf32>
    %80 = arith.addf %77, %79 : vector<8x512xf32>
    %81 = arith.addf %80, %1 : vector<8x512xf32>
    %cst_22 = arith.constant 0.000000e+00 : f32
    %82 = vector.broadcast %cst_22 : f32 to vector<8x512xf32>
    %83 = arith.maximumf %81, %82 : vector<8x512xf32>
    %c0_23 = arith.constant 0 : index
    %c0_24 = arith.constant 0 : index
    %c0_25 = arith.constant 0 : index
    %84 = vector.load %arg7[%c0_23, %c0_24, %c0_25] : memref<1x8x512xf32, #tpu.memory_space<vmem>>, vector<1x8x512xf32>
    %85 = vector.shape_cast %84 : vector<1x8x512xf32> to vector<8x512xf32>
    %86 = vector.shape_cast %83 : vector<8x512xf32> to vector<1x8x512xf32>
    tpu.vector_store %arg7[%c0_23, %c0_24, %c0_25], %86 {strides = array<i32>} : memref<1x8x512xf32, #tpu.memory_space<vmem>>, vector<1x8x512xf32>,
    return
  }
  func.func @transform_0(%arg0: i32) -> (i32, i32, i32) {
    %c0_i32 = arith.constant 0 : i32
    %c0_i32_0 = arith.constant 0 : i32
    %c0_i32_1 = arith.constant 0 : i32
    return %arg0, %c0_i32, %c0_i32_0 : i32, i32, i32
  }
  func.func @transform_1(%arg0: i32) -> (i32, i32) {
    %c0_i32 = arith.constant 0 : i32
    %c0_i32_0 = arith.constant 0 : i32
    %c0_i32_1 = arith.constant 0 : i32
    return %c0_i32, %c0_i32_0 : i32, i32
  }
  func.func @transform_2(%arg0: i32) -> (i32, i32) {
    %c0_i32 = arith.constant 0 : i32
    %c0_i32_0 = arith.constant 0 : i32
    %c0_i32_1 = arith.constant 0 : i32
    return %c0_i32, %c0_i32_0 : i32, i32
  }
  func.func @transform_3(%arg0: i32) -> (i32, i32) {
    %c0_i32 = arith.constant 0 : i32
    %c0_i32_0 = arith.constant 0 : i32
    %c0_i32_1 = arith.constant 0 : i32
    return %c0_i32, %c0_i32_0 : i32, i32
  }
  func.func @transform_4(%arg0: i32) -> (i32, i32) {
    %c0_i32 = arith.constant 0 : i32
    %c0_i32_0 = arith.constant 0 : i32
    %c0_i32_1 = arith.constant 0 : i32
    return %c0_i32, %c0_i32_0 : i32, i32
  }
  func.func @transform_5(%arg0: i32) -> (i32, i32) {
    %c0_i32 = arith.constant 0 : i32
    %c0_i32_0 = arith.constant 0 : i32
    %c0_i32_1 = arith.constant 0 : i32
    return %c0_i32, %c0_i32_0 : i32, i32
  }
  func.func @transform_6(%arg0: i32) -> (i32, i32, i32) {
    %c0_i32 = arith.constant 0 : i32
    %c0_i32_0 = arith.constant 0 : i32
    %c0_i32_1 = arith.constant 0 : i32
    return %arg0, %c0_i32, %c0_i32_0 : i32, i32, i32
  }
}

</mosaic_0001>

<llo_original>
// kernel: basic_block_pallas.1
$region0: #{basic_block_pallas.1}
  #allocation0 [shape = 'u32[]', space=smem, size = 0x4, offset = 0x4, fixed_abs, tag = 'smem constant byte address 0x4 - core index']
  #allocation1 [shape = 'u32[72,128]{1,0:T(1,128)}', space=vmem, size = 0x9000, scoped, tag = 'internal scratch']
  %s0 = inlined_call_operand.vmem [shape: f32[2,8,512], index: 0, kind: input, shape index: {}]
  %s1 = inlined_call_operand.vmem [shape: f32[8,72], index: 1, kind: input, shape index: {}]
  %s2 = inlined_call_operand.vmem [shape: f32[8,1], index: 2, kind: input, shape index: {}]
  %s3 = inlined_call_operand.vmem [shape: f32[8,72], index: 3, kind: input, shape index: {}]
  %s4 = inlined_call_operand.vmem [shape: f32[8,1], index: 4, kind: input, shape index: {}]
  %s5 = inlined_call_operand.vmem [shape: f32[8,512], index: 5, kind: input, shape index: {}]
  %s6 = inlined_call_operand.vmem [shape: f32[2,8,512], index: 6, kind: output, shape index: {}]
  %s7 = sld [smem:[#allocation0]]
  $region57: #{basic_block_pallas.1} parent=0
    _
  %s9 = ssub.s32 1, %s7
  %s10 = scalar_select 0, %s9, %s7
  loop: start=0, step=1, limit=4
  $region2: #{basic_block_pallas.1} parent=0 // loop_pre_header
    _
  $region3: #{basic_block_pallas.1} parent=0 // loop_header
    %s12 = sphi 0, %s16
    %p13 = scmp.ge.s32.totalorder %s12, 4
    %s22 = sphi 0, %s24
    %s25 = sphi 0, %s22
    %s26 = sphi 0, %s25
    %s42 = sphi 0, %s26
    %s46 = sphi 0, %s46
    %s48 = sphi 0, %s46
    %s49 = sphi 0, %s48
    %s63 = sphi 0, %s49
    %s67 = sphi 0, %s67
    %s69 = sphi 0, %s67
    %s70 = sphi 0, %s69
    %s84 = sphi 0, %s70
    %s88 = sphi 0, %s88
    %s90 = sphi 0, %s88
    %s91 = sphi 0, %s90
    %s105 = sphi 0, %s91
    %s109 = sphi 0, %s109
    %s111 = sphi 0, %s109
    %s112 = sphi 0, %s111
    %s126 = sphi 0, %s112
    %s130 = sphi 0, %s130
    %s132 = sphi 0, %s130
    %s133 = sphi 0, %s132
    %s147 = sphi 0, %s133
    %s153 = sphi 0, %s155
    %s156 = sphi 0, %s153
    %s157 = sphi 0, %s156
    %s173 = sphi 0, %s157
  $region4: #{basic_block_pallas.1} parent=0 // loop_header_branch
    %15 = sbr.rel (%p13) target = $region8
  $region5: #{basic_block_pallas.1} parent=0 // loop_body
    %s17 = ssub.s32 %s12, 1
    %s18 = ssub.s32 %s12, 2
    %s19 = sadd.s32 %s12, 1
    %s20 = ssub.s32 %s12, %s19
    %p21 = scmp.eq.s32.totalorder %s20, 0
    %s23 = sadd.s32 %s22, 1
    %s24 = scalar_select %p21, %s22, %s23
    %p27 = pneg %p21
    %p28 = scmp.eq.s32.totalorder %s12, 1
    %p29 = por %p27, %p28
    %p30 = scmp.ne.s32.totalorder %s22, %s25
    %p31 = scmp.eq.s32.totalorder %s12, 0
    %p32 = por %p30, %p31
    %p33 = scmp.ne.s32.totalorder %s22, %s25
    %p34 = scmp.eq.s32.totalorder %s17, 1
    %p35 = por %p33, %p34
    %p36 = scmp.ne.s32.totalorder %s25, %s26
    %p37 = scmp.eq.s32.totalorder %s17, 0
    %p38 = por %p36, %p37
    %p39 = scmp.ne.s32.totalorder %s25, %s26
    %p40 = scmp.eq.s32.totalorder %s18, 1
    %p41 = por %p39, %p40
    %p43 = scmp.ne.s32.totalorder %s26, %s42
    %p44 = scmp.eq.s32.totalorder %s18, 0
    %p45 = por %p43, %p44
    %s47 = sadd.s32 %s46, 1
    %p50 = scmp.eq.s32.totalorder %s12, 1
    %p51 = scmp.ne.s32.totalorder %s46, %s48
    %p52 = scmp.eq.s32.totalorder %s12, 0
    %p53 = por %p51, %p52
    %p54 = scmp.ne.s32.totalorder %s46, %s48
    %p55 = scmp.eq.s32.totalorder %s17, 1
    %p56 = por %p54, %p55
    %p57 = scmp.ne.s32.totalorder %s48, %s49
    %p58 = scmp.eq.s32.totalorder %s17, 0
    %p59 = por %p57, %p58
    %p60 = scmp.ne.s32.totalorder %s48, %s49
    %p61 = scmp.eq.s32.totalorder %s18, 1
    %p62 = por %p60, %p61
    %p64 = scmp.ne.s32.totalorder %s49, %s63
    %p65 = scmp.eq.s32.totalorder %s18, 0
    %p66 = por %p64, %p65
    %s68 = sadd.s32 %s67, 1
    %p71 = scmp.eq.s32.totalorder %s12, 1
    %p72 = scmp.ne.s32.totalorder %s67, %s69
    %p73 = scmp.eq.s32.totalorder %s12, 0
    %p74 = por %p72, %p73
    %p75 = scmp.ne.s32.totalorder %s67, %s69
    %p76 = scmp.eq.s32.totalorder %s17, 1
    %p77 = por %p75, %p76
    %p78 = scmp.ne.s32.totalorder %s69, %s70
    %p79 = scmp.eq.s32.totalorder %s17, 0
    %p80 = por %p78, %p79
    %p81 = scmp.ne.s32.totalorder %s69, %s70
    %p82 = scmp.eq.s32.totalorder %s18, 1
    %p83 = por %p81, %p82
    %p85 = scmp.ne.s32.totalorder %s70, %s84
    %p86 = scmp.eq.s32.totalorder %s18, 0
    %p87 = por %p85, %p86
    %s89 = sadd.s32 %s88, 1
    %p92 = scmp.eq.s32.totalorder %s12, 1
    %p93 = scmp.ne.s32.totalorder %s88, %s90
    %p94 = scmp.eq.s32.totalorder %s12, 0
    %p95 = por %p93, %p94
    %p96 = scmp.ne.s32.totalorder %s88, %s90
    %p97 = scmp.eq.s32.totalorder %s17, 1
    %p98 = por %p96, %p97
    %p99 = scmp.ne.s32.totalorder %s90, %s91
    %p100 = scmp.eq.s32.totalorder %s17, 0
    %p101 = por %p99, %p100
    %p102 = scmp.ne.s32.totalorder %s90, %s91
    %p103 = scmp.eq.s32.totalorder %s18, 1
    %p104 = por %p102, %p103
    %p106 = scmp.ne.s32.totalorder %s91, %s105
    %p107 = scmp.eq.s32.totalorder %s18, 0
    %p108 = por %p106, %p107
    %s110 = sadd.s32 %s109, 1
    %p113 = scmp.eq.s32.totalorder %s12, 1
    %p114 = scmp.ne.s32.totalorder %s109, %s111
    %p115 = scmp.eq.s32.totalorder %s12, 0
    %p116 = por %p114, %p115
    %p117 = scmp.ne.s32.totalorder %s109, %s111
    %p118 = scmp.eq.s32.totalorder %s17, 1
    %p119 = por %p117, %p118
    %p120 = scmp.ne.s32.totalorder %s111, %s112
    %p121 = scmp.eq.s32.totalorder %s17, 0
    %p122 = por %p120, %p121
    %p123 = scmp.ne.s32.totalorder %s111, %s112
    %p124 = scmp.eq.s32.totalorder %s18, 1
    %p125 = por %p123, %p124
    %p127 = scmp.ne.s32.totalorder %s112, %s126
    %p128 = scmp.eq.s32.totalorder %s18, 0
    %p129 = por %p127, %p128
    %s131 = sadd.s32 %s130, 1
    %p134 = scmp.eq.s32.totalorder %s12, 1
    %p135 = scmp.ne.s32.totalorder %s130, %s132
    %p136 = scmp.eq.s32.totalorder %s12, 0
    %p137 = por %p135, %p136
    %p138 = scmp.ne.s32.totalorder %s130, %s132
    %p139 = scmp.eq.s32.totalorder %s17, 1
    %p140 = por %p138, %p139
    %p141 = scmp.ne.s32.totalorder %s132, %s133
    %p142 = scmp.eq.s32.totalorder %s17, 0
    %p143 = por %p141, %p142
    %p144 = scmp.ne.s32.totalorder %s132, %s133
    %p145 = scmp.eq.s32.totalorder %s18, 1
    %p146 = por %p144, %p145
    %p148 = scmp.ne.s32.totalorder %s133, %s147
    %p149 = scmp.eq.s32.totalorder %s18, 0
    %p150 = por %p148, %p149
    %s151 = ssub.s32 %s12, %s19
    %p152 = scmp.eq.s32.totalorder %s151, 0
    %s154 = sadd.s32 %s153, 1
    %s155 = scalar_select %p152, %s153, %s154
    %p158 = pneg %p152
    %p159 = scmp.eq.s32.totalorder %s12, 1
    %p160 = por %p158, %p159
    %p161 = scmp.ne.s32.totalorder %s153, %s156
    %p162 = scmp.eq.s32.totalorder %s12, 0
    %p163 = por %p161, %p162
    %p164 = scmp.ne.s32.totalorder %s153, %s156
    %p165 = scmp.eq.s32.totalorder %s17, 1
    %p166 = por %p164, %p165
    %p167 = scmp.ne.s32.totalorder %s156, %s157
    %p168 = scmp.eq.s32.totalorder %s17, 0
    %p169 = por %p167, %p168
    %p170 = scmp.ne.s32.totalorder %s156, %s157
    %p171 = scmp.eq.s32.totalorder %s18, 1
    %p172 = por %p170, %p171
    %p174 = scmp.ne.s32.totalorder %s157, %s173
    %p175 = scmp.eq.s32.totalorder %s18, 0
    %p176 = por %p174, %p175
    %p177 = scmp.le.s32.totalorder 1, %s12
    %p178 = scmp.lt.s32.totalorder %s12, 3
    %p179 = pnand %p177, %p178
    %p180 = pneg %p179
    // Predicated region
    $region9: #{basic_block_pallas.1} parent=5 // pred_check
      _
    $region10: #{basic_block_pallas.1} parent=5 // pred_check_branch
      %182 = sbr.rel (%p179) target = $region12
    $region11: #{basic_block_pallas.1} parent=5 // pred_region
      %s183 = ssub.s32 %s12, 1
      // Predicated region
      $region13: #{basic_block_pallas.1} parent=11 // pred_check
        %p184 = pneg %p59
      $region14: #{basic_block_pallas.1} parent=11 // pred_check_branch
        %186 = sbr.rel (%p184) target = $region16
      $region15: #{basic_block_pallas.1} parent=11 // pred_region
        _
      $region16: #{basic_block_pallas.1} parent=11 // pred_fallthru
        _
      // Predicated region
      $region17: #{basic_block_pallas.1} parent=11 // pred_check
        %p187 = pneg %p80
      $region18: #{basic_block_pallas.1} parent=11 // pred_check_branch
        %189 = sbr.rel (%p187) target = $region20
      $region19: #{basic_block_pallas.1} parent=11 // pred_region
        _
      $region20: #{basic_block_pallas.1} parent=11 // pred_fallthru
        _
      // Predicated region
      $region21: #{basic_block_pallas.1} parent=11 // pred_check
        %p190 = pneg %p101
      $region22: #{basic_block_pallas.1} parent=11 // pred_check_branch
        %192 = sbr.rel (%p190) target = $region24
      $region23: #{basic_block_pallas.1} parent=11 // pred_region
        _
      $region24: #{basic_block_pallas.1} parent=11 // pred_fallthru
        _
      // Predicated region
      $region25: #{basic_block_pallas.1} parent=11 // pred_check
        %p193 = pneg %p122
      $region26: #{basic_block_pallas.1} parent=11 // pred_check_branch
        %195 = sbr.rel (%p193) target = $region28
      $region27: #{basic_block_pallas.1} parent=11 // pred_region
        _
      $region28: #{basic_block_pallas.1} parent=11 // pred_fallthru
        _
      // Predicated region
      $region29: #{basic_block_pallas.1} parent=11 // pred_check
        %p196 = pneg %p143
      $region30: #{basic_block_pallas.1} parent=11 // pred_check_branch
        %198 = sbr.rel (%p196) target = $region32
      $region31: #{basic_block_pallas.1} parent=11 // pred_region
        _
      $region32: #{basic_block_pallas.1} parent=11 // pred_fallthru
        _
    $region12: #{basic_block_pallas.1} parent=5 // pred_fallthru
      _
    %p199 = scmp.lt.s32.totalorder %s12, 2
    // Predicated region
    $region33: #{basic_block_pallas.1} parent=5 // pred_check
      %p200 = pneg %p199
    $region34: #{basic_block_pallas.1} parent=5 // pred_check_branch
      %202 = sbr.rel (%p200) target = $region36
    $region35: #{basic_block_pallas.1} parent=5 // pred_region
      // Predicated region
      $region37: #{basic_block_pallas.1} parent=35 // pred_check
        %p203 = pneg %p32
      $region38: #{basic_block_pallas.1} parent=35 // pred_check_branch
        %205 = sbr.rel (%p203) target = $region40
      $region39: #{basic_block_pallas.1} parent=35 // pred_region
        %p206 = scmp.lt.s32.totalorder %s12, 1
        %s207 = scalar_select %p206, %s12, 1
        %s208 = smul.addr %s207, 4
        %s209 = smul.addr %s208, 8
        %s210 = scalar_lea.vmem %s0, %s209
      $region40: #{basic_block_pallas.1} parent=35 // pred_fallthru
        _
    $region36: #{basic_block_pallas.1} parent=5 // pred_fallthru
      _
    %p211 = scmp.le.s32.totalorder 1, %s12
    %p212 = scmp.lt.s32.totalorder %s12, 3
    %p213 = pnand %p211, %p212
    %p214 = pneg %p213
    // Predicated region
    $region41: #{basic_block_pallas.1} parent=5 // pred_check
      _
    $region42: #{basic_block_pallas.1} parent=5 // pred_check_branch
      %216 = sbr.rel (%p213) target = $region44
    $region43: #{basic_block_pallas.1} parent=5 // pred_region
      %s217 = ssub.s32 %s12, 1
      %p218 = scmp.lt.s32.totalorder %s17, 1
      %s219 = scalar_select %p218, %s17, 1
      %s220 = smul.addr %s219, 4
      %s221 = smul.addr %s220, 8
      %s222 = scalar_lea.vmem %s0, %s221
      %p223 = pneg %p38
      %p224 = pneg %p35
      %p225 = pneg %p59
      %p226 = pneg %p56
      %p227 = pneg %p80
      %p228 = pneg %p77
      %p229 = pneg %p101
      %p230 = pneg %p98
      %p231 = pneg %p122
      %p232 = pneg %p119
      %p233 = pneg %p143
      %p234 = pneg %p140
      %p235 = pneg %p169
      %p236 = pneg %p166
      %p237 = scmp.lt.s32.totalorder %s17, 1
      %s238 = scalar_select %p237, %s17, 1
      %s239 = smul.addr %s238, 4
      %s240 = smul.addr %s239, 8
      %s241 = scalar_lea.vmem %s6, %s240
      %p242 = scmp.lt.s32.totalorder %s17, 1
      %s243 = scalar_select %p242, %s17, 1
      %s244 = smul.addr %s243, 4
      %s245 = smul.addr %s244, 8
      %s246 = scalar_lea.vmem %s0, %s245
      %p247 = scmp.lt.s32.totalorder %s17, 1
      %s248 = scalar_select %p247, %s17, 1
      %s249 = smul.addr %s248, 4
      %s250 = smul.addr %s249, 8
      %s251 = scalar_lea.vmem %s6, %s250
      %v252 = vld [vmem:[%s246] sm:$0xff]
      %v253 = vld [vmem:[%s246 + $0x8] sm:$0xff]
      %v254 = vld [vmem:[%s246 + $0x10] sm:$0xff]
      %v255 = vld [vmem:[%s246 + $0x18] sm:$0xff]
      %v256 = vld [vmem:[%s5] sm:$0xff]
      %v257 = vld [vmem:[%s5 + $0x8] sm:$0xff]
      %v258 = vld [vmem:[%s5 + $0x10] sm:$0xff]
      %v259 = vld [vmem:[%s5 + $0x18] sm:$0xff]
      %260 = vrot.lane.b32.xlu0 %v252, 17
      %v261 = vpop.permute.xlu0 %260
      %262 = vrot.lane.b32.xlu0 %v253, 17
      %v263 = vpop.permute.xlu0 %262
      %264 = vrot.lane.b32.xlu0 %v254, 17
      %v265 = vpop.permute.xlu0 %264
      %266 = vrot.lane.b32.xlu0 %v255, 17
      %v267 = vpop.permute.xlu0 %266
      %v268 = vlaneseq
      %v269 = vand.u32 %v268, 127
      %vm270 = vcmp.lt.s32.totalorder %v269, 17
      %v271 = vsel %vm270, %v265, %v267
      %v272 = vsel %vm270, %v263, %v265
      %v273 = vsel %vm270, %v261, %v263
      %v274 = vsel %vm270, %v267, %v261
      %v275 = vperm.slane %v256, 0
      %v276 = vperm.slane %v257, 0
      %v277 = vperm.slane %v258, 0
      %v278 = vperm.slane %v259, 0
      %v279 = vmul.f32 %v274, %v275
      %v280 = vmul.f32 %v273, %v276
      %v281 = vmul.f32 %v272, %v277
      %v282 = vmul.f32 %v271, %v278
      %283 = vrot.lane.b32.xlu0 %v252, 16
      %v284 = vpop.permute.xlu0 %283
      %285 = vrot.lane.b32.xlu0 %v253, 16
      %v286 = vpop.permute.xlu0 %285
      %287 = vrot.lane.b32.xlu0 %v254, 16
      %v288 = vpop.permute.xlu0 %287
      %289 = vrot.lane.b32.xlu0 %v255, 16
      %v290 = vpop.permute.xlu0 %289
      %vm291 = vcmp.lt.s32.totalorder %v269, 16
      %v292 = vsel %vm291, %v288, %v290
      %v293 = vsel %vm291, %v286, %v288
      %v294 = vsel %vm291, %v284, %v286
      %v295 = vsel %vm291, %v290, %v284
      %v296 = vperm.slane %v256, 1
      %v297 = vperm.slane %v257, 1
      %v298 = vperm.slane %v258, 1
      %v299 = vperm.slane %v259, 1
      %v300 = vmul.f32 %v295, %v296
      %v301 = vmul.f32 %v294, %v297
      %v302 = vmul.f32 %v293, %v298
      %v303 = vmul.f32 %v292, %v299
      %304 = vrot.lane.b32.xlu0 %v252, 15
      %v305 = vpop.permute.xlu0 %304
      %306 = vrot.lane.b32.xlu0 %v253, 15
      %v307 = vpop.permute.xlu0 %306
      %308 = vrot.lane.b32.xlu0 %v254, 15
      %v309 = vpop.permute.xlu0 %308
      %310 = vrot.lane.b32.xlu0 %v255, 15
      %v311 = vpop.permute.xlu0 %310
      %vm312 = vcmp.lt.s32.totalorder %v269, 15
      %v313 = vsel %vm312, %v309, %v311
      %v314 = vsel %vm312, %v307, %v309
      %v315 = vsel %vm312, %v305, %v307
      %v316 = vsel %vm312, %v311, %v305
      %v317 = vperm.slane %v256, 2
      %v318 = vperm.slane %v257, 2
      %v319 = vperm.slane %v258, 2
      %v320 = vperm.slane %v259, 2
      %v321 = vmul.f32 %v316, %v317
      %v322 = vmul.f32 %v315, %v318
      %v323 = vmul.f32 %v314, %v319
      %v324 = vmul.f32 %v313, %v320
      %325 = vrot.lane.b32.xlu0 %v252, 1
      %v326 = vpop.permute.xlu0 %325
      %327 = vrot.lane.b32.xlu0 %v253, 1
      %v328 = vpop.permute.xlu0 %327
      %329 = vrot.lane.b32.xlu0 %v254, 1
      %v330 = vpop.permute.xlu0 %329
      %331 = vrot.lane.b32.xlu0 %v255, 1
      %v332 = vpop.permute.xlu0 %331
      %vm333 = vcmp.lt.s32.totalorder %v269, 1
      %v334 = vsel %vm333, %v330, %v332
      %v335 = vsel %vm333, %v328, %v330
      %v336 = vsel %vm333, %v326, %v328
      %v337 = vsel %vm333, %v332, %v326
      %v338 = vperm.slane %v256, 3
      %v339 = vperm.slane %v257, 3
      %v340 = vperm.slane %v258, 3
      %v341 = vperm.slane %v259, 3
      %v342 = vmul.f32 %v337, %v338
      %v343 = vmul.f32 %v336, %v339
      %v344 = vmul.f32 %v335, %v340
      %v345 = vmul.f32 %v334, %v341
      %346 = vrot.lane.b32.xlu0 %v252, 127
      %v347 = vpop.permute.xlu0 %346
      %348 = vrot.lane.b32.xlu0 %v253, 127
      %v349 = vpop.permute.xlu0 %348
      %350 = vrot.lane.b32.xlu0 %v254, 127
      %v351 = vpop.permute.xlu0 %350
      %352 = vrot.lane.b32.xlu0 %v255, 127
      %v353 = vpop.permute.xlu0 %352
      %vm354 = vcmp.lt.s32.totalorder %v269, 127
      %v355 = vsel %vm354, %v351, %v353
      %v356 = vsel %vm354, %v349, %v351
      %v357 = vsel %vm354, %v347, %v349
      %v358 = vsel %vm354, %v353, %v347
      %v359 = vperm.slane %v256, 4
      %v360 = vperm.slane %v257, 4
      %v361 = vperm.slane %v258, 4
      %v362 = vperm.slane %v259, 4
      %v363 = vmul.f32 %v357, %v359
      %v364 = vmul.f32 %v356, %v360
      %v365 = vmul.f32 %v355, %v361
      %v366 = vmul.f32 %v358, %v362
      %367 = vrot.lane.b32.xlu0 %v252, 113
      %v368 = vpop.permute.xlu0 %367
      %369 = vrot.lane.b32.xlu0 %v253, 113
      %v370 = vpop.permute.xlu0 %369
      %371 = vrot.lane.b32.xlu0 %v254, 113
      %v372 = vpop.permute.xlu0 %371
      %373 = vrot.lane.b32.xlu0 %v255, 113
      %v374 = vpop.permute.xlu0 %373
      %vm375 = vcmp.lt.s32.totalorder %v269, 113
      %v376 = vsel %vm375, %v372, %v374
      %v377 = vsel %vm375, %v370, %v372
      %v378 = vsel %vm375, %v368, %v370
      %v379 = vsel %vm375, %v374, %v368
      %v380 = vperm.slane %v256, 5
      %v381 = vperm.slane %v257, 5
      %v382 = vperm.slane %v258, 5
      %v383 = vperm.slane %v259, 5
      %v384 = vmul.f32 %v378, %v380
      %v385 = vmul.f32 %v377, %v381
      %v386 = vmul.f32 %v376, %v382
      %v387 = vmul.f32 %v379, %v383
      %388 = vrot.lane.b32.xlu0 %v252, 112
      %v389 = vpop.permute.xlu0 %388
      %390 = vrot.lane.b32.xlu0 %v253, 112
      %v391 = vpop.permute.xlu0 %390
      %392 = vrot.lane.b32.xlu0 %v254, 112
      %v393 = vpop.permute.xlu0 %392
      %394 = vrot.lane.b32.xlu0 %v255, 112
      %v395 = vpop.permute.xlu0 %394
      %vm396 = vcmp.lt.s32.totalorder %v269, 112
      %v397 = vsel %vm396, %v393, %v395
      %v398 = vsel %vm396, %v391, %v393
      %v399 = vsel %vm396, %v389, %v391
      %v400 = vsel %vm396, %v395, %v389
      %v401 = vperm.slane %v256, 6
      %v402 = vperm.slane %v257, 6
      %v403 = vperm.slane %v258, 6
      %v404 = vperm.slane %v259, 6
      %v405 = vmul.f32 %v399, %v401
      %v406 = vmul.f32 %v398, %v402
      %v407 = vmul.f32 %v397, %v403
      %v408 = vmul.f32 %v400, %v404
      %409 = vrot.lane.b32.xlu0 %v252, 111
      %v410 = vpop.permute.xlu0 %409
      %411 = vrot.lane.b32.xlu0 %v253, 111
      %v412 = vpop.permute.xlu0 %411
      %413 = vrot.lane.b32.xlu0 %v254, 111
      %v414 = vpop.permute.xlu0 %413
      %415 = vrot.lane.b32.xlu0 %v255, 111
      %v416 = vpop.permute.xlu0 %415
      %vm417 = vcmp.lt.s32.totalorder %v269, 111
      %v418 = vsel %vm417, %v414, %v416
      %v419 = vsel %vm417, %v412, %v414
      %v420 = vsel %vm417, %v410, %v412
      %v421 = vsel %vm417, %v416, %v410
      %v422 = vperm.slane %v256, 7
      %v423 = vperm.slane %v257, 7
      %v424 = vperm.slane %v258, 7
      %v425 = vperm.slane %v259, 7
      %v426 = vmul.f32 %v420, %v422
      %v427 = vmul.f32 %v419, %v423
      %v428 = vmul.f32 %v418, %v424
      %v429 = vmul.f32 %v421, %v425
      %v430 = vld [vmem:[%s1] sm:$0xff]
      %v431 = vld [vmem:[%s2] sm:$0xff]
      %433 = vset.pattern.permute.xlu0 0
      %434 = vperm.xlu0 %433, %v431
      %v435 = vpop.permute.xlu0 %434
      %vm437 = vcmask 588800
      %v439 = vsel %vm437, %v430, 0
      %441 = vmatpush.msra.mxu0 0.0
      %442 = vmatpush.msra.mxu0 0.0
      %443 = vmatpush.msra.mxu0 0.0
      %444 = vmatpush.msra.mxu0 0.0
      %445 = vmatpush.msra.mxu0 0.0
      %446 = vmatpush.msra.mxu0 0.0
      %447 = vmatpush.msra.mxu0 0.0
      %448 = vmatpush.msra.mxu0 %v426
      %449 = vmatpush.msra.mxu0 %v405
      %450 = vmatpush.msra.mxu0 %v384
      %451 = vmatpush.msra.mxu0 %v363
      %452 = vmatpush.msra.mxu0 %v252
      %453 = vmatpush.msra.mxu0 %v342
      %454 = vmatpush.msra.mxu0 %v321
      %455 = vmatpush.msra.mxu0 %v300
      %456 = vmatpush.msra.mxu0 %v279
      %457 = vmatmul.f32.gmra.mxu0 %v439
      %v458 = vpop.f32.mrf.mxu0
      %v459 = vadd.f32 %v435, %v458
      %460 = vdwg.mxu0
      %461 = vmatpush.msra.mxu0 0.0
      %462 = vmatpush.msra.mxu0 0.0
      %463 = vmatpush.msra.mxu0 0.0
      %464 = vmatpush.msra.mxu0 0.0
      %465 = vmatpush.msra.mxu0 0.0
      %466 = vmatpush.msra.mxu0 0.0
      %467 = vmatpush.msra.mxu0 0.0
      %468 = vmatpush.msra.mxu0 %v427
      %469 = vmatpush.msra.mxu0 %v406
      %470 = vmatpush.msra.mxu0 %v385
      %471 = vmatpush.msra.mxu0 %v364
      %472 = vmatpush.msra.mxu0 %v253
      %473 = vmatpush.msra.mxu0 %v343
      %474 = vmatpush.msra.mxu0 %v322
      %475 = vmatpush.msra.mxu0 %v301
      %476 = vmatpush.msra.mxu0 %v280
      %477 = vmatmul.f32.gmra.mxu0 %v439
      %v478 = vpop.f32.mrf.mxu0
      %v479 = vadd.f32 %v435, %v478
      %480 = vdwg.mxu0
      %481 = vmatpush.msra.mxu0 0.0
      %482 = vmatpush.msra.mxu0 0.0
      %483 = vmatpush.msra.mxu0 0.0
      %484 = vmatpush.msra.mxu0 0.0
      %485 = vmatpush.msra.mxu0 0.0
      %486 = vmatpush.msra.mxu0 0.0
      %487 = vmatpush.msra.mxu0 0.0
      %488 = vmatpush.msra.mxu0 %v428
      %489 = vmatpush.msra.mxu0 %v407
      %490 = vmatpush.msra.mxu0 %v386
      %491 = vmatpush.msra.mxu0 %v365
      %492 = vmatpush.msra.mxu0 %v254
      %493 = vmatpush.msra.mxu0 %v344
      %494 = vmatpush.msra.mxu0 %v323
      %495 = vmatpush.msra.mxu0 %v302
      %496 = vmatpush.msra.mxu0 %v281
      %497 = vmatmul.f32.gmra.mxu0 %v439
      %v498 = vpop.f32.mrf.mxu0
      %v499 = vadd.f32 %v435, %v498
      %500 = vdwg.mxu0
      %501 = vmatpush.msra.mxu0 0.0
      %502 = vmatpush.msra.mxu0 0.0
      %503 = vmatpush.msra.mxu0 0.0
      %504 = vmatpush.msra.mxu0 0.0
      %505 = vmatpush.msra.mxu0 0.0
      %506 = vmatpush.msra.mxu0 0.0
      %507 = vmatpush.msra.mxu0 0.0
      %508 = vmatpush.msra.mxu0 %v429
      %509 = vmatpush.msra.mxu0 %v408
      %510 = vmatpush.msra.mxu0 %v387
      %511 = vmatpush.msra.mxu0 %v366
      %512 = vmatpush.msra.mxu0 %v255
      %513 = vmatpush.msra.mxu0 %v345
      %514 = vmatpush.msra.mxu0 %v324
      %515 = vmatpush.msra.mxu0 %v303
      %516 = vmatpush.msra.mxu0 %v282
      %517 = vmatmul.f32.gmra.mxu0 %v439
      %v518 = vpop.f32.mrf.mxu0
      %v519 = vadd.f32 %v435, %v518
      %520 = vdwg.mxu0
      %v521 = vmax.f32 %v459, 0.0
      %v522 = vmax.f32 %v479, 0.0
      %v523 = vmax.f32 %v499, 0.0
      %v524 = vmax.f32 %v519, 0.0
      %525 = vrot.lane.b32.xlu0 %v521, 17
      %v526 = vpop.permute.xlu0 %525
      %527 = vrot.lane.b32.xlu0 %v522, 17
      %v528 = vpop.permute.xlu0 %527
      %529 = vrot.lane.b32.xlu0 %v523, 17
      %v530 = vpop.permute.xlu0 %529
      %531 = vrot.lane.b32.xlu0 %v524, 17
      %v532 = vpop.permute.xlu0 %531
      %v533 = vsel %vm270, %v530, %v532
      %v534 = vsel %vm270, %v528, %v530
      %v535 = vsel %vm270, %v526, %v528
      %v536 = vsel %vm270, %v532, %v526
      %v537 = vmul.f32 %v536, %v275
      %v538 = vmul.f32 %v535, %v276
      %v539 = vmul.f32 %v534, %v277
      %v540 = vmul.f32 %v533, %v278
      %541 = vrot.lane.b32.xlu0 %v521, 16
      %v542 = vpop.permute.xlu0 %541
      %543 = vrot.lane.b32.xlu0 %v522, 16
      %v544 = vpop.permute.xlu0 %543
      %545 = vrot.lane.b32.xlu0 %v523, 16
      %v546 = vpop.permute.xlu0 %545
      %547 = vrot.lane.b32.xlu0 %v524, 16
      %v548 = vpop.permute.xlu0 %547
      %v549 = vsel %vm291, %v546, %v548
      %v550 = vsel %vm291, %v544, %v546
      %v551 = vsel %vm291, %v542, %v544
      %v552 = vsel %vm291, %v548, %v542
      %v553 = vmul.f32 %v552, %v296
      %v554 = vmul.f32 %v551, %v297
      %v555 = vmul.f32 %v550, %v298
      %v556 = vmul.f32 %v549, %v299
      %557 = vrot.lane.b32.xlu0 %v521, 15
      %v558 = vpop.permute.xlu0 %557
      %559 = vrot.lane.b32.xlu0 %v522, 15
      %v560 = vpop.permute.xlu0 %559
      %561 = vrot.lane.b32.xlu0 %v523, 15
      %v562 = vpop.permute.xlu0 %561
      %563 = vrot.lane.b32.xlu0 %v524, 15
      %v564 = vpop.permute.xlu0 %563
      %v565 = vsel %vm312, %v562, %v564
      %v566 = vsel %vm312, %v560, %v562
      %v567 = vsel %vm312, %v558, %v560
      %v568 = vsel %vm312, %v564, %v558
      %v569 = vmul.f32 %v568, %v317
      %v570 = vmul.f32 %v567, %v318
      %v571 = vmul.f32 %v566, %v319
      %v572 = vmul.f32 %v565, %v320
      %573 = vrot.lane.b32.xlu0 %v521, 1
      %v574 = vpop.permute.xlu0 %573
      %575 = vrot.lane.b32.xlu0 %v522, 1
      %v576 = vpop.permute.xlu0 %575
      %577 = vrot.lane.b32.xlu0 %v523, 1
      %v578 = vpop.permute.xlu0 %577
      %579 = vrot.lane.b32.xlu0 %v524, 1
      %v580 = vpop.permute.xlu0 %579
      %v581 = vsel %vm333, %v578, %v580
      %v582 = vsel %vm333, %v576, %v578
      %v583 = vsel %vm333, %v574, %v576
      %v584 = vsel %vm333, %v580, %v574
      %v585 = vmul.f32 %v584, %v338
      %v586 = vmul.f32 %v583, %v339
      %v587 = vmul.f32 %v582, %v340
      %v588 = vmul.f32 %v581, %v341
      %589 = vrot.lane.b32.xlu0 %v521, 127
      %v590 = vpop.permute.xlu0 %589
      %591 = vrot.lane.b32.xlu0 %v522, 127
      %v592 = vpop.permute.xlu0 %591
      %593 = vrot.lane.b32.xlu0 %v523, 127
      %v594 = vpop.permute.xlu0 %593
      %595 = vrot.lane.b32.xlu0 %v524, 127
      %v596 = vpop.permute.xlu0 %595
      %v597 = vsel %vm354, %v594, %v596
      %v598 = vsel %vm354, %v592, %v594
      %v599 = vsel %vm354, %v590, %v592
      %v600 = vsel %vm354, %v596, %v590
      %v601 = vmul.f32 %v599, %v359
      %v602 = vmul.f32 %v598, %v360
      %v603 = vmul.f32 %v597, %v361
      %v604 = vmul.f32 %v600, %v362
      %605 = vrot.lane.b32.xlu0 %v521, 113
      %v606 = vpop.permute.xlu0 %605
      %607 = vrot.lane.b32.xlu0 %v522, 113
      %v608 = vpop.permute.xlu0 %607
      %609 = vrot.lane.b32.xlu0 %v523, 113
      %v610 = vpop.permute.xlu0 %609
      %611 = vrot.lane.b32.xlu0 %v524, 113
      %v612 = vpop.permute.xlu0 %611
      %v613 = vsel %vm375, %v610, %v612
      %v614 = vsel %vm375, %v608, %v610
      %v615 = vsel %vm375, %v606, %v608
      %v616 = vsel %vm375, %v612, %v606
      %v617 = vmul.f32 %v615, %v380
      %v618 = vmul.f32 %v614, %v381
      %v619 = vmul.f32 %v613, %v382
      %v620 = vmul.f32 %v616, %v383
      %621 = vrot.lane.b32.xlu0 %v521, 112
      %v622 = vpop.permute.xlu0 %621
      %623 = vrot.lane.b32.xlu0 %v522, 112
      %v624 = vpop.permute.xlu0 %623
      %625 = vrot.lane.b32.xlu0 %v523, 112
      %v626 = vpop.permute.xlu0 %625
      %627 = vrot.lane.b32.xlu0 %v524, 112
      %v628 = vpop.permute.xlu0 %627
      %v629 = vsel %vm396, %v626, %v628
      %v630 = vsel %vm396, %v624, %v626
      %v631 = vsel %vm396, %v622, %v624
      %v632 = vsel %vm396, %v628, %v622
      %v633 = vmul.f32 %v631, %v401
      %v634 = vmul.f32 %v630, %v402
      %v635 = vmul.f32 %v629, %v403
      %v636 = vmul.f32 %v632, %v404
      %637 = vrot.lane.b32.xlu0 %v521, 111
      %v638 = vpop.permute.xlu0 %637
      %639 = vrot.lane.b32.xlu0 %v522, 111
      %v640 = vpop.permute.xlu0 %639
      %641 = vrot.lane.b32.xlu0 %v523, 111
      %v642 = vpop.permute.xlu0 %641
      %643 = vrot.lane.b32.xlu0 %v524, 111
      %v644 = vpop.permute.xlu0 %643
      %v645 = vsel %vm417, %v642, %v644
      %v646 = vsel %vm417, %v640, %v642
      %v647 = vsel %vm417, %v638, %v640
      %v648 = vsel %vm417, %v644, %v638
      %v649 = vmul.f32 %v647, %v422
      %v650 = vmul.f32 %v646, %v423
      %v651 = vmul.f32 %v645, %v424
      %v652 = vmul.f32 %v648, %v425
      %v653 = vld [vmem:[%s3] sm:$0xff]
      %v654 = vld [vmem:[%s4] sm:$0xff]
      %656 = vset.pattern.permute.xlu0 0
      %657 = vperm.xlu0 %656, %v654
      %v658 = vpop.permute.xlu0 %657
      %v661 = vsel %vm437, %v653, 0
      %663 = vmatpush.msra.mxu0 0.0
      %664 = vmatpush.msra.mxu0 0.0
      %665 = vmatpush.msra.mxu0 0.0
      %666 = vmatpush.msra.mxu0 0.0
      %667 = vmatpush.msra.mxu0 0.0
      %668 = vmatpush.msra.mxu0 0.0
      %669 = vmatpush.msra.mxu0 0.0
      %670 = vmatpush.msra.mxu0 %v649
      %671 = vmatpush.msra.mxu0 %v633
      %672 = vmatpush.msra.mxu0 %v617
      %673 = vmatpush.msra.mxu0 %v601
      %674 = vmatpush.msra.mxu0 %v521
      %675 = vmatpush.msra.mxu0 %v585
      %676 = vmatpush.msra.mxu0 %v569
      %677 = vmatpush.msra.mxu0 %v553
      %678 = vmatpush.msra.mxu0 %v537
      %679 = vmatmul.f32.gmra.mxu0 %v661
      %v680 = vpop.f32.mrf.mxu0
      %v681 = vadd.f32 %v658, %v680
      %682 = vdwg.mxu0
      %683 = vmatpush.msra.mxu0 0.0
      %684 = vmatpush.msra.mxu0 0.0
      %685 = vmatpush.msra.mxu0 0.0
      %686 = vmatpush.msra.mxu0 0.0
      %687 = vmatpush.msra.mxu0 0.0
      %688 = vmatpush.msra.mxu0 0.0
      %689 = vmatpush.msra.mxu0 0.0
      %690 = vmatpush.msra.mxu0 %v650
      %691 = vmatpush.msra.mxu0 %v634
      %692 = vmatpush.msra.mxu0 %v618
      %693 = vmatpush.msra.mxu0 %v602
      %694 = vmatpush.msra.mxu0 %v522
      %695 = vmatpush.msra.mxu0 %v586
      %696 = vmatpush.msra.mxu0 %v570
      %697 = vmatpush.msra.mxu0 %v554
      %698 = vmatpush.msra.mxu0 %v538
      %699 = vmatmul.f32.gmra.mxu0 %v661
      %v700 = vpop.f32.mrf.mxu0
      %v701 = vadd.f32 %v658, %v700
      %702 = vdwg.mxu0
      %703 = vmatpush.msra.mxu0 0.0
      %704 = vmatpush.msra.mxu0 0.0
      %705 = vmatpush.msra.mxu0 0.0
      %706 = vmatpush.msra.mxu0 0.0
      %707 = vmatpush.msra.mxu0 0.0
      %708 = vmatpush.msra.mxu0 0.0
      %709 = vmatpush.msra.mxu0 0.0
      %710 = vmatpush.msra.mxu0 %v651
      %711 = vmatpush.msra.mxu0 %v635
      %712 = vmatpush.msra.mxu0 %v619
      %713 = vmatpush.msra.mxu0 %v603
      %714 = vmatpush.msra.mxu0 %v523
      %715 = vmatpush.msra.mxu0 %v587
      %716 = vmatpush.msra.mxu0 %v571
      %717 = vmatpush.msra.mxu0 %v555
      %718 = vmatpush.msra.mxu0 %v539
      %719 = vmatmul.f32.gmra.mxu0 %v661
      %v720 = vpop.f32.mrf.mxu0
      %v721 = vadd.f32 %v658, %v720
      %722 = vdwg.mxu0
      %723 = vmatpush.msra.mxu0 0.0
      %724 = vmatpush.msra.mxu0 0.0
      %725 = vmatpush.msra.mxu0 0.0
      %726 = vmatpush.msra.mxu0 0.0
      %727 = vmatpush.msra.mxu0 0.0
      %728 = vmatpush.msra.mxu0 0.0
      %729 = vmatpush.msra.mxu0 0.0
      %730 = vmatpush.msra.mxu0 %v652
      %731 = vmatpush.msra.mxu0 %v636
      %732 = vmatpush.msra.mxu0 %v620
      %733 = vmatpush.msra.mxu0 %v604
      %734 = vmatpush.msra.mxu0 %v524
      %735 = vmatpush.msra.mxu0 %v588
      %736 = vmatpush.msra.mxu0 %v572
      %737 = vmatpush.msra.mxu0 %v556
      %738 = vmatpush.msra.mxu0 %v540
      %739 = vmatmul.f32.gmra.mxu0 %v661
      %v740 = vpop.f32.mrf.mxu0
      %v741 = vadd.f32 %v658, %v740
      %742 = vdwg.mxu0
      %v743 = vadd.f32 %v681, %v252
      %v744 = vadd.f32 %v701, %v253
      %v745 = vadd.f32 %v721, %v254
      %v746 = vadd.f32 %v741, %v255
      %v747 = vmax.f32 %v743, 0.0
      %v748 = vmax.f32 %v744, 0.0
      %v749 = vmax.f32 %v745, 0.0
      %v750 = vmax.f32 %v746, 0.0
      %751 = vst [vmem:[%s251] sm:$0xff] %v747
      %752 = vst [vmem:[%s251 + $0x8] sm:$0xff] %v748
      %753 = vst [vmem:[%s251 + $0x10] sm:$0xff] %v749
      %754 = vst [vmem:[%s251 + $0x18] sm:$0xff] %v750
      %p755 = scmp.lt.s32.totalorder %s17, 1
      %s756 = scalar_select %p755, %s17, 1
      %s757 = smul.addr %s756, 4
      %s758 = smul.addr %s757, 8
      %s759 = scalar_lea.vmem %s6, %s758
      // Predicated region
      $region45: #{basic_block_pallas.1} parent=43 // pred_check
        %p760 = pneg %p166
      $region46: #{basic_block_pallas.1} parent=43 // pred_check_branch
        %762 = sbr.rel (%p760) target = $region48
      $region47: #{basic_block_pallas.1} parent=43 // pred_region
        _
      $region48: #{basic_block_pallas.1} parent=43 // pred_fallthru
        _
    $region44: #{basic_block_pallas.1} parent=5 // pred_fallthru
      _
    %p763 = scmp.le.s32.totalorder 2, %s12
    // Predicated region
    $region49: #{basic_block_pallas.1} parent=5 // pred_check
      %p764 = pneg %p763
    $region50: #{basic_block_pallas.1} parent=5 // pred_check_branch
      %766 = sbr.rel (%p764) target = $region52
    $region51: #{basic_block_pallas.1} parent=5 // pred_region
      %s767 = ssub.s32 %s12, 2
      // Predicated region
      $region53: #{basic_block_pallas.1} parent=51 // pred_check
        %p768 = pneg %p172
      $region54: #{basic_block_pallas.1} parent=51 // pred_check_branch
        %770 = sbr.rel (%p768) target = $region56
      $region55: #{basic_block_pallas.1} parent=51 // pred_region
        %p771 = scmp.lt.s32.totalorder %s18, 1
        %s772 = scalar_select %p771, %s18, 1
        %s773 = smul.addr %s772, 4
        %s774 = smul.addr %s773, 8
        %s775 = scalar_lea.vmem %s6, %s774
      $region56: #{basic_block_pallas.1} parent=51 // pred_fallthru
        _
    $region52: #{basic_block_pallas.1} parent=5 // pred_fallthru
      _
  $region6: #{basic_block_pallas.1} parent=0 // loop_footer
    %s16 = sadd.s32 1, %s12
  $region7: #{basic_block_pallas.1} parent=0 // loop_footer_branch
    %11 = sbr.rel target = $region3
  $region8: #{basic_block_pallas.1} parent=0 // loop_exit
    _

</llo_original>
